<compile_context>
chip_gen: v7x
topology: tpu7x:2x2x1
jax: 0.10.0
libtpu: 0.0.40
codegen_flags: <defaults>
</compile_context>

<pallas_src>
import functools

import jax
import jax.numpy as jnp
from jax import lax
from jax.experimental import pallas as pl
from jax.experimental.pallas import tpu as pltpu

_MIB = 1024 * 1024


def _round_up(x, m):
    return ((x + m - 1) // m) * m


def _sublane_multiple(dtype):
    """Sublane packing granularity: 8 rows for f32, 16 for bf16, 32 for int8/fp8."""
    return 8 * max(1, 4 // jnp.dtype(dtype).itemsize)


def _vmem_caps():
    """(physical_vmem, vmem_limit, tile_budget) derived from the current chip."""
    try:
        cap = int(pltpu.get_tpu_info().vmem_capacity_bytes)
    except Exception:  # pragma: no cover - conservative (v7x-sized) fallback
        cap = 64 * _MIB
    limit = (cap * 3) // 4        # ~96 MiB on 128 MiB parts (v5e/v6e), ~48 MiB on v7x
    budget = (limit * 5) // 6     # headroom for compiler scratch / pipelining
    return cap, limit, budget


def _estimate_vmem(bt, tq, Lk_p, D, Dv_p, q_isz, out_isz, attn_isz):
    """Rough per-step VMEM footprint (double-buffered I/O + f32 intermediates)."""
    resident = 2 * bt * Lk_p * (D + Dv_p) * q_isz                    # K, V blocks
    per_tile = 2 * bt * tq * (D * q_isz + Dv_p * out_isz + Lk_p * attn_isz)
    scratch = 3 * bt * tq * Lk_p * 4                                 # s / p / attn (f32)
    return resident + per_tile + scratch


def _pick_tile_q(Lq, Lk_p, D, Dv_p, q_isz, out_isz, attn_isz, budget, sub):
    """Largest query tile (divisor of Lq, multiple of the sublane pack) that fits."""
    def fits(tq):
        return _estimate_vmem(1, tq, Lk_p, D, Dv_p, q_isz, out_isz, attn_isz) <= budget

    if fits(Lq):
        return Lq
    cands = sorted({t for t in range(sub, Lq, sub) if Lq % t == 0}, reverse=True)
    # Prefer MXU-filling multiples of 128 (2x256x256 on v6e/v7x, 4x128x128 on v5e).
    ordered = [t for t in cands if t % 128 == 0] + [t for t in cands if t % 128 != 0]
    for t in ordered:
        if fits(t):
            return t
    return min(cands) if cands else Lq


def _pick_tile_b(B, Lq, Lk_p, D, Dv_p, q_isz, out_isz, attn_isz, budget):
    """Batch elements per grid step (amortizes ~0.35us/step pipeline overhead)."""
    per_b = _estimate_vmem(1, Lq, Lk_p, D, Dv_p, q_isz, out_isz, attn_isz)
    bt = max(1, min(B, budget // max(per_b, 1)))
    while B % bt:
        bt -= 1
    return bt


def _sdpa_kernel(scale_ref, q_ref, k_ref, v_ref, out_ref, attn_ref, *, lk_valid):
    """One grid step: a (Bt, Tq) slab of queries against all (padded) keys/values.

    scale_ref : SMEM (1,) f32 holding 1/temperature (no recompile per value)
    q_ref     : VMEM (Bt, Tq, D)
    k_ref     : VMEM (Bt, Lk_p, D)    -- resident across the Lq grid axis
    v_ref     : VMEM (Bt, Lk_p, Dv_p) -- resident across the Lq grid axis
    out_ref   : VMEM (Bt, Tq, Dv_p)   -- lane-dense (128-multiple) store
    attn_ref  : VMEM (Bt, Tq, Lk_p)   -- lane-dense (128-multiple) store
    """
    # Fold 1/temperature into Q (Tq*D elements) instead of scaling the much
    # larger (Tq*Lk) score matrix.
    scale = scale_ref[0]
    q = (q_ref[...] * scale).astype(k_ref.dtype)
    k = k_ref[...]
    v = v_ref[...]

    # scores = q @ k^T: contract the shared feature axis directly on the MXU
    # (no explicit k.T -> no XLU transpose / extra VMEM intermediate).
    s = lax.dot_general(q, k,
                        dimension_numbers=(((2,), (2,)), ((0,), (0,))),
                        preferred_element_type=jnp.float32)       # (Bt, Tq, Lk_p) f32

    # Mask out zero-padded key columns (Lk padded to a multiple of 128 so the
    # attn output store is a full-width vst instead of a masked vst.msk).
    if lk_valid != s.shape[-1]:
        col = lax.broadcasted_iota(jnp.int32, s.shape, 2)
        s = jnp.where(col < lk_valid, s, -jnp.inf)

    # Softmax over the key axis (PyTorch Softmax(dim=2)), max-subtracted.
    m = jnp.max(s, axis=-1, keepdims=True)
    p = jnp.exp(s - m)
    denom = jnp.sum(p, axis=-1, keepdims=True)
    attn = p * pl.reciprocal(denom, approx=True)                  # EUP vrcp: own slot

    # Single down-cast over the largest intermediate, reused for store + matmul.
    attn_store = attn.astype(attn_ref.dtype)
    attn_mm = attn_store if attn_ref.dtype == v_ref.dtype else attn.astype(v_ref.dtype)
    attn_ref[...] = attn_store

    # output = attn @ v (batched, f32 accumulation on the MXU).
    out = lax.dot_general(attn_mm, v,
                          dimension_numbers=(((2,), (1,)), ((0,), (0,))),
                          preferred_element_type=jnp.float32)     # (Bt, Tq, Dv_p) f32
    out_ref[...] = out.astype(out_ref.dtype)


def scaled_dot_product_attention(q, k, v, temperature, *, attn_dtype=None,
                                 tile_q=None, tile_b=None):
    """q: (B, Lq, D), k: (B, Lk, D), v: (B, Lk, Dv) -> (output, attn)."""
    B, Lq, D = q.shape
    Bk, Lk, Dk = k.shape
    Bv, Lkv, Dv = v.shape
    assert D == Dk and Bk == B and Bv == B and Lkv == Lk

    out_dtype = q.dtype
    attn_dtype = jnp.dtype(out_dtype if attn_dtype is None else attn_dtype)

    # Lane-dense outputs: pad the key axis (attn's last dim) and Dv (out's last
    # dim) to multiples of 128 so both output stores are unmasked vst; the
    # padding is sliced off outside the pallas_call. Padded key rows are zero
    # in K/V and masked to -inf in the kernel before the softmax.
    Lk_p = _round_up(Lk, 128)
    Dv_p = _round_up(Dv, 128)
    k_p = k if Lk_p == Lk else jnp.pad(k, ((0, 0), (0, Lk_p - Lk), (0, 0)))
    v_p = v
    if Lk_p != Lk:
        v_p = jnp.pad(v_p, ((0, 0), (0, Lk_p - Lk), (0, 0)))
    if Dv_p != Dv:
        v_p = jnp.pad(v_p, ((0, 0), (0, 0), (0, Dv_p - Dv)))

    q_isz = jnp.dtype(q.dtype).itemsize
    out_isz = jnp.dtype(out_dtype).itemsize
    attn_isz = attn_dtype.itemsize
    sub = _sublane_multiple(q.dtype)

    cap, vmem_limit, budget = _vmem_caps()

    tq = tile_q if tile_q is not None else _pick_tile_q(
        Lq, Lk_p, D, Dv_p, q_isz, out_isz, attn_isz, budget, sub)
    assert Lq % tq == 0, "Lq must be divisible by the query tile"

    if tile_b is not None:
        bt = tile_b
    elif tq == Lq:
        # Whole sequence fits in one tile: batch several B elements per step.
        bt = _pick_tile_b(B, Lq, Lk_p, D, Dv_p, q_isz, out_isz, attn_isz, budget)
    else:
        bt = 1
    assert B % bt == 0

    # Keep both v7x TensorCores busy: ensure >= 2 grid steps when the shape
    # allows it (one extra ~0.35us step on 1-TC v5e/v6e is negligible).
    if tile_q is None and tile_b is None and (B // bt) * (Lq // tq) < 2:
        if B >= 2:
            bt = max(d for d in range(1, B // 2 + 1) if B % d == 0)
        elif tq == Lq and Lq % (2 * sub) == 0:
            tq = Lq // 2

    est = _estimate_vmem(bt, tq, Lk_p, D, Dv_p, q_isz, out_isz, attn_isz)
    if est > cap:
        raise ValueError(
            f"Attention working set (~{est // _MIB} MiB) exceeds physical VMEM "
            f"({cap // _MIB} MiB); Lk={Lk} needs a flash-style Lk-tiled kernel "
            "(TODO(synk)).")
    vmem_limit = int(max(vmem_limit, min(cap, est + 4 * _MIB)))

    # 1/temperature as an SMEM scalar: no retrace/recompile per temperature.
    inv_temp = (1.0 / jnp.asarray(temperature, jnp.float32)).reshape(1)

    # Lq axis is last (fastest varying): K/V block index is constant along it,
    # so Pallas keeps them VMEM-resident instead of re-DMAing per query tile.
    grid = (B // bt, Lq // tq)

    out_shapes = (
        jax.ShapeDtypeStruct((B, Lq, Dv_p), out_dtype),
        jax.ShapeDtypeStruct((B, Lq, Lk_p), attn_dtype),
    )

    out_p, attn_p = pl.pallas_call(
        functools.partial(_sdpa_kernel, lk_valid=Lk),
        out_shape=out_shapes,
        grid_spec=pltpu.PrefetchScalarGridSpec(
            num_scalar_prefetch=0,
            grid=grid,
            in_specs=[
                pl.BlockSpec(memory_space=pltpu.MemorySpace.SMEM),       # 1/temperature
                pl.BlockSpec((bt, tq, D), lambda b, i: (b, i, 0)),       # q
                pl.BlockSpec((bt, Lk_p, D), lambda b, i: (b, 0, 0)),     # k (resident over i)
                pl.BlockSpec((bt, Lk_p, Dv_p), lambda b, i: (b, 0, 0)),  # v (resident over i)
            ],
            out_specs=[
                pl.BlockSpec((bt, tq, Dv_p), lambda b, i: (b, i, 0)),    # output
                pl.BlockSpec((bt, tq, Lk_p), lambda b, i: (b, i, 0)),    # attn
            ],
        ),
        compiler_params=pltpu.CompilerParams(
            dimension_semantics=("parallel", "parallel"),
            vmem_limit_bytes=vmem_limit,
        ),
    )(inv_temp, q, k_p, v_p)

    out = out_p if Dv_p == Dv else out_p[:, :, :Dv]
    attn = attn_p if Lk_p == Lk else attn_p[:, :, :Lk]
    return out, attn


def _reference(q, k, v, temperature):
    attn = jnp.einsum("bqd,bkd->bqk", q, k) / temperature
    attn = jax.nn.softmax(attn, axis=2)
    out = jnp.einsum("bqk,bkd->bqd", attn, v)
    return out, attn


if __name__ == "__main__":
    key = jax.random.PRNGKey(0)

    # 1) Small module-consistent f32 shapes, fully-resident K/V path.
    B, Lq, Lk, D, Dv = 2, 8, 8, 32, 32
    temperature = float(D) ** 0.5  # standard sqrt(d_k)
    kq, kk, kv = jax.random.split(key, 3)
    q = jax.random.normal(kq, (B, Lq, D), dtype=jnp.float32)
    k = jax.random.normal(kk, (B, Lk, D), dtype=jnp.float32)
    v = jax.random.normal(kv, (B, Lk, Dv), dtype=jnp.float32)

    out, attn = scaled_dot_product_attention(q, k, v, temperature)
    out, attn = jax.block_until_ready((out, attn))
    ref_out, ref_attn = _reference(q, k, v, temperature)
    # approx=True EUP reciprocal slightly loosens the comparison tolerance.
    assert jnp.allclose(out, ref_out, atol=2e-3, rtol=2e-3)
    assert jnp.allclose(attn, ref_attn, atol=2e-3, rtol=2e-3)

    # 2) Tiled-Lq path (K/V resident across query tiles).
    B2, Lq2, Lk2, D2, Dv2 = 2, 32, 32, 32, 32
    kq2, kk2, kv2 = jax.random.split(jax.random.PRNGKey(1), 3)
    q2 = jax.random.normal(kq2, (B2, Lq2, D2), dtype=jnp.float32)
    k2 = jax.random.normal(kk2, (B2, Lk2, D2), dtype=jnp.float32)
    v2 = jax.random.normal(kv2, (B2, Lk2, Dv2), dtype=jnp.float32)
    out2, attn2 = scaled_dot_product_attention(
        q2, k2, v2, float(D2) ** 0.5, tile_q=16, tile_b=1)
    out2, attn2 = jax.block_until_ready((out2, attn2))
    ref_out2, ref_attn2 = _reference(q2, k2, v2, float(D2) ** 0.5)
    assert jnp.allclose(out2, ref_out2, atol=2e-3, rtol=2e-3)
    assert jnp.allclose(attn2, ref_attn2, atol=2e-3, rtol=2e-3)

    # 3) bf16 inputs with bf16 attention output (exercises the single down-cast
    #    reuse, the attn_dtype knob, and 16-row sublane alignment).
    B3, Lq3, Lk3, D3, Dv3 = 2, 16, 8, 32, 32
    kq3, kk3, kv3 = jax.random.split(jax.random.PRNGKey(2), 3)
    q3 = jax.random.normal(kq3, (B3, Lq3, D3), dtype=jnp.bfloat16)
    k3 = jax.random.normal(kk3, (B3, Lk3, D3), dtype=jnp.bfloat16)
    v3 = jax.random.normal(kv3, (B3, Lk3, Dv3), dtype=jnp.bfloat16)
    out3, attn3 = scaled_dot_product_attention(
        q3, k3, v3, float(D3) ** 0.5, attn_dtype=jnp.bfloat16)
    out3, attn3 = jax.block_until_ready((out3, attn3))
    ref_out3, ref_attn3 = _reference(q3.astype(jnp.float32),
                                     k3.astype(jnp.float32),
                                     v3.astype(jnp.float32), float(D3) ** 0.5)
    assert jnp.allclose(out3.astype(jnp.float32), ref_out3, atol=2e-1, rtol=1e-1)
    assert jnp.allclose(attn3.astype(jnp.float32), ref_attn3, atol=1e-1, rtol=1e-1)

    print("KERNEL_OK")
</pallas_src>

<mosaic_0001>
module attributes {stable_mosaic.version = 11 : i64} {
  func.func @_sdpa_kernel(%arg0: i32, %arg1: i32, %arg2: memref<1xf32, #tpu.memory_space<smem>>, %arg3: memref<1x8x32xf32, #tpu.memory_space<vmem>>, %arg4: memref<1x128x32xf32, #tpu.memory_space<vmem>>, %arg5: memref<1x128x128xf32, #tpu.memory_space<vmem>>, %arg6: memref<1x8x128xf32, #tpu.memory_space<vmem>>, %arg7: memref<1x8x128xf32, #tpu.memory_space<vmem>>) attributes {dimension_semantics = [#tpu.dimension_semantics<parallel>, #tpu.dimension_semantics<parallel>], iteration_bounds = array<i64: 2, 1>, scalar_prefetch = 0 : i64, scratch_operands = 0 : i64, tpu.core_type = #tpu.core_type<tc>, window_params = [{transform_indices = @transform_0, window_bounds = array<i64: 1>}, {transform_indices = @transform_1, window_bounds = array<i64: 1, 8, 32>}, {transform_indices = @transform_2, window_bounds = array<i64: 1, 128, 32>}, {transform_indices = @transform_3, window_bounds = array<i64: 1, 128, 128>}, {transform_indices = @transform_4, window_bounds = array<i64: 1, 8, 128>}, {transform_indices = @transform_5, window_bounds = array<i64: 1, 8, 128>}]} {
    %c0 = arith.constant 0 : index
    %0 = memref.load %arg2[%c0] : memref<1xf32, #tpu.memory_space<smem>>
    %c0_0 = arith.constant 0 : index
    %c0_1 = arith.constant 0 : index
    %c0_2 = arith.constant 0 : index
    %1 = vector.load %arg3[%c0_0, %c0_1, %c0_2] : memref<1x8x32xf32, #tpu.memory_space<vmem>>, vector<1x8x32xf32>
    %2 = vector.broadcast %0 : f32 to vector<1x8x32xf32>
    %3 = arith.mulf %1, %2 : vector<1x8x32xf32>
    %c0_3 = arith.constant 0 : index
    %c0_4 = arith.constant 0 : index
    %c0_5 = arith.constant 0 : index
    %4 = vector.load %arg4[%c0_3, %c0_4, %c0_5] : memref<1x128x32xf32, #tpu.memory_space<vmem>>, vector<1x128x32xf32>
    %c0_6 = arith.constant 0 : index
    %c0_7 = arith.constant 0 : index
    %c0_8 = arith.constant 0 : index
    %5 = vector.load %arg5[%c0_6, %c0_7, %c0_8] : memref<1x128x128xf32, #tpu.memory_space<vmem>>, vector<1x128x128xf32>
    %cst = arith.constant dense<0.000000e+00> : vector<1x8x128xf32>
    %6 = tpu.matmul %3, %4, %cst {dimension_numbers = #tpu.dot_dimension_numbers<[2], [2], [1], [1], [0, 0, 0, 1, 1, 1], [0], [0]>} : vector<1x8x32xf32>, vector<1x128x32xf32>, vector<1x8x128xf32> -> vector<1x8x128xf32>
    %7 = tpu.iota {dimensions = array<i32: 2>} : vector<1x8x128xi32>
    %c8_i32 = arith.constant 8 : i32
    %8 = vector.broadcast %c8_i32 : i32 to vector<1x8x128xi32>
    %9 = arith.cmpi slt, %7, %8 : vector<1x8x128xi32>
    %cst_9 = arith.constant 0xFF800000 : f32
    %10 = vector.broadcast %cst_9 : f32 to vector<1x8x128xf32>
    %11 = arith.select %9, %6, %10 : vector<1x8x128xi1>, vector<1x8x128xf32>
    %cst_10 = arith.constant dense<0xFF800000> : vector<1x8xf32>
    %12 = vector.multi_reduction <maximumf>, %11, %cst_10 [2] : vector<1x8x128xf32> to vector<1x8xf32>
    %13 = vector.shape_cast %12 : vector<1x8xf32> to vector<1x8x1xf32>
    %14 = vector.broadcast %13 : vector<1x8x1xf32> to vector<1x8x128xf32>
    %15 = arith.subf %11, %14 : vector<1x8x128xf32>
    %16 = math.exp %15 : vector<1x8x128xf32>
    %cst_11 = arith.constant dense<0.000000e+00> : vector<1x8xf32>
    %17 = vector.multi_reduction <add>, %16, %cst_11 [2] : vector<1x8x128xf32> to vector<1x8xf32>
    %18 = vector.shape_cast %17 : vector<1x8xf32> to vector<1x8x1xf32>
    %19 = tpu.reciprocal %18 {approx = true} : vector<1x8x1xf32> -> vector<1x8x1xf32>
    %20 = vector.broadcast %19 : vector<1x8x1xf32> to vector<1x8x128xf32>
    %21 = arith.mulf %16, %20 : vector<1x8x128xf32>
    %c0_12 = arith.constant 0 : index
    %c0_13 = arith.constant 0 : index
    %c0_14 = arith.constant 0 : index
    %22 = vector.load %arg7[%c0_12, %c0_13, %c0_14] : memref<1x8x128xf32, #tpu.memory_space<vmem>>, vector<1x8x128xf32>
    tpu.vector_store %arg7[%c0_12, %c0_13, %c0_14], %21 {strides = array<i32>} : memref<1x8x128xf32, #tpu.memory_space<vmem>>, vector<1x8x128xf32>,
    %cst_15 = arith.constant dense<0.000000e+00> : vector<1x8x128xf32>
    %23 = tpu.matmul %21, %5, %cst_15 {dimension_numbers = #tpu.dot_dimension_numbers<[2], [1], [1], [2], [0, 0, 0, 1, 1, 2], [0], [0]>} : vector<1x8x128xf32>, vector<1x128x128xf32>, vector<1x8x128xf32> -> vector<1x8x128xf32>
    %c0_16 = arith.constant 0 : index
    %c0_17 = arith.constant 0 : index
    %c0_18 = arith.constant 0 : index
    %24 = vector.load %arg6[%c0_16, %c0_17, %c0_18] : memref<1x8x128xf32, #tpu.memory_space<vmem>>, vector<1x8x128xf32>
    tpu.vector_store %arg6[%c0_16, %c0_17, %c0_18], %23 {strides = array<i32>} : memref<1x8x128xf32, #tpu.memory_space<vmem>>, vector<1x8x128xf32>,
    return
  }
  func.func @transform_0(%arg0: i32, %arg1: i32) -> i32 {
    %c0_i32 = arith.constant 0 : i32
    %c0_i32_0 = arith.constant 0 : i32
    return %c0_i32 : i32
  }
  func.func @transform_1(%arg0: i32, %arg1: i32) -> (i32, i32, i32) {
    %c0_i32 = arith.constant 0 : i32
    %c0_i32_0 = arith.constant 0 : i32
    return %arg0, %arg1, %c0_i32 : i32, i32, i32
  }
  func.func @transform_2(%arg0: i32, %arg1: i32) -> (i32, i32, i32) {
    %c0_i32 = arith.constant 0 : i32
    %c0_i32_0 = arith.constant 0 : i32
    %c0_i32_1 = arith.constant 0 : i32
    return %arg0, %c0_i32, %c0_i32_0 : i32, i32, i32
  }
  func.func @transform_3(%arg0: i32, %arg1: i32) -> (i32, i32, i32) {
    %c0_i32 = arith.constant 0 : i32
    %c0_i32_0 = arith.constant 0 : i32
    %c0_i32_1 = arith.constant 0 : i32
    return %arg0, %c0_i32, %c0_i32_0 : i32, i32, i32
  }
  func.func @transform_4(%arg0: i32, %arg1: i32) -> (i32, i32, i32) {
    %c0_i32 = arith.constant 0 : i32
    %c0_i32_0 = arith.constant 0 : i32
    return %arg0, %arg1, %c0_i32 : i32, i32, i32
  }
  func.func @transform_5(%arg0: i32, %arg1: i32) -> (i32, i32, i32) {
    %c0_i32 = arith.constant 0 : i32
    %c0_i32_0 = arith.constant 0 : i32
    return %arg0, %arg1, %c0_i32 : i32, i32, i32
  }
}

</mosaic_0001>

<llo_original>
// kernel: tpu_custom_call.1
$region0: #{tpu_custom_call.1}
  #allocation0 [shape = 'u32[]', space=smem, size = 0x4, offset = 0x4, fixed_abs, tag = 'smem constant byte address 0x4 - core index']
  #allocation1 [shape = 'u32[144,128]{1,0:T(1,128)}', space=vmem, size = 0x12000, scoped, tag = 'internal scratch']
  #allocation2 [shape = 'f32[1]{0:T(128)S(6)}', space=smem, size = 0x200, scoped, tag = 'scoped memory for tpu_custom_call.1']
  %s0 = inlined_call_operand.<no memory space> [shape: f32[1], index: 0, kind: input, shape index: {}]
  %s1 = inlined_call_operand.vmem [shape: f32[2,8,32], index: 1, kind: input, shape index: {}]
  %s2 = inlined_call_operand.vmem [shape: f32[2,128,32], index: 2, kind: input, shape index: {}]
  %s3 = inlined_call_operand.vmem [shape: f32[2,128,128], index: 3, kind: input, shape index: {}]
  %s4 = inlined_call_operand.hbm [shape: f32[2,8,128], index: 4, kind: output, shape index: {0}]
  %s5 = inlined_call_operand.hbm [shape: f32[2,8,128], index: 5, kind: output, shape index: {1}]
  %6 = xla_tuple %s4, %s5
  %s7 = sld [smem:[#allocation0]]
  $region57: #{tpu_custom_call.1} parent=0
    _
  %s9 = ssub.s32 1, %s7
  %s10 = scalar_select 0, %s9, %s7
  %11 = sst [smem:[#allocation2]] %s0
  $region1: #{tpu_custom_call.1} parent=0
    #allocation3 [shape = 'u8[8192]{0}', space=vmem, size = 0x2000, scoped, tag = 'output window, operand 0']
    #allocation4 [shape = 's32[2]{0}', space=sflag, size = 0x8, scoped, tag = 'scoped memory for tpu_custom_call.1']
    #allocation5 [shape = 'u8[8192]{0}', space=vmem, size = 0x2000, scoped, tag = 'output window, operand 1']
    #allocation6 [shape = 's32[2]{0}', space=sflag, size = 0x8, scoped, tag = 'scoped memory for tpu_custom_call.1']
    %12 = vsyncpa [#allocation4], 0
    %s13 = scalar_lea.sflag [#allocation4], 1
    %14 = vsyncpa %s13, 0
    %15 = vsyncpa [#allocation6], 0
    %s16 = scalar_lea.sflag [#allocation6], 1
    %17 = vsyncpa %s16, 0
    loop: start=0, step=1, limit=4
    $region2: #{tpu_custom_call.1} parent=1 // loop_pre_header
      _
    $region3: #{tpu_custom_call.1} parent=1 // loop_header
      %s19 = sphi 0, %s23
      %p20 = scmp.ge.s32.totalorder %s19, 4
      %s26 = sphi 0, %s38
      %s27 = sphi 0, %s34
      %s28 = sphi 0, %s26
      %s29 = sphi 0, %s27
      %s30 = sphi 0, %s28
      %s31 = sphi 0, %s29
      %s39 = sphi 0, %s39
      %s41 = sphi 0, %s39
      %s42 = sphi 0, %s41
      %s56 = sphi 0, %s42
      %s64 = sphi 0, %s66
      %s67 = sphi 0, %s64
      %s68 = sphi 0, %s67
      %s84 = sphi 0, %s68
      %s90 = sphi 0, %s92
      %s93 = sphi 0, %s90
      %s94 = sphi 0, %s93
      %s110 = sphi 0, %s94
      %s116 = sphi 0, %s118
      %s119 = sphi 0, %s116
      %s120 = sphi 0, %s119
      %s136 = sphi 0, %s120
      %s144 = sphi 0, %s146
      %s147 = sphi 0, %s144
      %s148 = sphi 0, %s147
      %s164 = sphi 0, %s148
      %s172 = sphi 0, %s174
      %s175 = sphi 0, %s172
      %s176 = sphi 0, %s175
      %s192 = sphi 0, %s176
    $region4: #{tpu_custom_call.1} parent=1 // loop_header_branch
      %22 = sbr.rel (%p20) target = $region8
    $region5: #{tpu_custom_call.1} parent=1 // loop_body
      %s24 = ssub.s32 %s19, 1
      %s25 = ssub.s32 %s19, 2
      %s32 = sadd.s32 1, %s27
      %p33 = scmp.ge.s32.totalorder %s32, 1
      %s34 = scalar_select %p33, 0, %s32
      %s35 = sadd.s32 1, %s26
      %s36 = scalar_select %p33, %s35, %s26
      %p37 = scmp.ge.s32.totalorder %s36, 2
      %s38 = scalar_select %p37, 0, %s36
      %s40 = sadd.s32 %s39, 1
      %p43 = scmp.eq.s32.totalorder %s19, 1
      %p44 = scmp.ne.s32.totalorder %s39, %s41
      %p45 = scmp.eq.s32.totalorder %s19, 0
      %p46 = por %p44, %p45
      %p47 = scmp.ne.s32.totalorder %s39, %s41
      %p48 = scmp.eq.s32.totalorder %s24, 1
      %p49 = por %p47, %p48
      %p50 = scmp.ne.s32.totalorder %s41, %s42
      %p51 = scmp.eq.s32.totalorder %s24, 0
      %p52 = por %p50, %p51
      %p53 = scmp.ne.s32.totalorder %s41, %s42
      %p54 = scmp.eq.s32.totalorder %s25, 1
      %p55 = por %p53, %p54
      %p57 = scmp.ne.s32.totalorder %s42, %s56
      %p58 = scmp.eq.s32.totalorder %s25, 0
      %p59 = por %p57, %p58
      %s60 = ssub.s32 %s26, %s38
      %s61 = ssub.s32 %s27, %s34
      %s62 = sor.u32 %s60, %s61
      %p63 = scmp.eq.s32.totalorder %s62, 0
      %s65 = sadd.s32 %s64, 1
      %s66 = scalar_select %p63, %s64, %s65
      %p69 = pneg %p63
      %p70 = scmp.eq.s32.totalorder %s19, 1
      %p71 = por %p69, %p70
      %p72 = scmp.ne.s32.totalorder %s64, %s67
      %p73 = scmp.eq.s32.totalorder %s19, 0
      %p74 = por %p72, %p73
      %p75 = scmp.ne.s32.totalorder %s64, %s67
      %p76 = scmp.eq.s32.totalorder %s24, 1
      %p77 = por %p75, %p76
      %p78 = scmp.ne.s32.totalorder %s67, %s68
      %p79 = scmp.eq.s32.totalorder %s24, 0
      %p80 = por %p78, %p79
      %p81 = scmp.ne.s32.totalorder %s67, %s68
      %p82 = scmp.eq.s32.totalorder %s25, 1
      %p83 = por %p81, %p82
      %p85 = scmp.ne.s32.totalorder %s68, %s84
      %p86 = scmp.eq.s32.totalorder %s25, 0
      %p87 = por %p85, %p86
      %s88 = ssub.s32 %s26, %s38
      %p89 = scmp.eq.s32.totalorder %s88, 0
      %s91 = sadd.s32 %s90, 1
      %s92 = scalar_select %p89, %s90, %s91
      %p95 = pneg %p89
      %p96 = scmp.eq.s32.totalorder %s19, 1
      %p97 = por %p95, %p96
      %p98 = scmp.ne.s32.totalorder %s90, %s93
      %p99 = scmp.eq.s32.totalorder %s19, 0
      %p100 = por %p98, %p99
      %p101 = scmp.ne.s32.totalorder %s90, %s93
      %p102 = scmp.eq.s32.totalorder %s24, 1
      %p103 = por %p101, %p102
      %p104 = scmp.ne.s32.totalorder %s93, %s94
      %p105 = scmp.eq.s32.totalorder %s24, 0
      %p106 = por %p104, %p105
      %p107 = scmp.ne.s32.totalorder %s93, %s94
      %p108 = scmp.eq.s32.totalorder %s25, 1
      %p109 = por %p107, %p108
      %p111 = scmp.ne.s32.totalorder %s94, %s110
      %p112 = scmp.eq.s32.totalorder %s25, 0
      %p113 = por %p111, %p112
      %s114 = ssub.s32 %s26, %s38
      %p115 = scmp.eq.s32.totalorder %s114, 0
      %s117 = sadd.s32 %s116, 1
      %s118 = scalar_select %p115, %s116, %s117
      %p121 = pneg %p115
      %p122 = scmp.eq.s32.totalorder %s19, 1
      %p123 = por %p121, %p122
      %p124 = scmp.ne.s32.totalorder %s116, %s119
      %p125 = scmp.eq.s32.totalorder %s19, 0
      %p126 = por %p124, %p125
      %p127 = scmp.ne.s32.totalorder %s116, %s119
      %p128 = scmp.eq.s32.totalorder %s24, 1
      %p129 = por %p127, %p128
      %p130 = scmp.ne.s32.totalorder %s119, %s120
      %p131 = scmp.eq.s32.totalorder %s24, 0
      %p132 = por %p130, %p131
      %p133 = scmp.ne.s32.totalorder %s119, %s120
      %p134 = scmp.eq.s32.totalorder %s25, 1
      %p135 = por %p133, %p134
      %p137 = scmp.ne.s32.totalorder %s120, %s136
      %p138 = scmp.eq.s32.totalorder %s25, 0
      %p139 = por %p137, %p138
      %s140 = ssub.s32 %s26, %s38
      %s141 = ssub.s32 %s27, %s34
      %s142 = sor.u32 %s140, %s141
      %p143 = scmp.eq.s32.totalorder %s142, 0
      %s145 = sadd.s32 %s144, 1
      %s146 = scalar_select %p143, %s144, %s145
      %p149 = pneg %p143
      %p150 = scmp.eq.s32.totalorder %s19, 1
      %p151 = por %p149, %p150
      %p152 = scmp.ne.s32.totalorder %s144, %s147
      %p153 = scmp.eq.s32.totalorder %s19, 0
      %p154 = por %p152, %p153
      %p155 = scmp.ne.s32.totalorder %s144, %s147
      %p156 = scmp.eq.s32.totalorder %s24, 1
      %p157 = por %p155, %p156
      %p158 = scmp.ne.s32.totalorder %s147, %s148
      %p159 = scmp.eq.s32.totalorder %s24, 0
      %p160 = por %p158, %p159
      %p161 = scmp.ne.s32.totalorder %s147, %s148
      %p162 = scmp.eq.s32.totalorder %s25, 1
      %p163 = por %p161, %p162
      %p165 = scmp.ne.s32.totalorder %s148, %s164
      %p166 = scmp.eq.s32.totalorder %s25, 0
      %p167 = por %p165, %p166
      %s168 = ssub.s32 %s26, %s38
      %s169 = ssub.s32 %s27, %s34
      %s170 = sor.u32 %s168, %s169
      %p171 = scmp.eq.s32.totalorder %s170, 0
      %s173 = sadd.s32 %s172, 1
      %s174 = scalar_select %p171, %s172, %s173
      %p177 = pneg %p171
      %p178 = scmp.eq.s32.totalorder %s19, 1
      %p179 = por %p177, %p178
      %p180 = scmp.ne.s32.totalorder %s172, %s175
      %p181 = scmp.eq.s32.totalorder %s19, 0
      %p182 = por %p180, %p181
      %p183 = scmp.ne.s32.totalorder %s172, %s175
      %p184 = scmp.eq.s32.totalorder %s24, 1
      %p185 = por %p183, %p184
      %p186 = scmp.ne.s32.totalorder %s175, %s176
      %p187 = scmp.eq.s32.totalorder %s24, 0
      %p188 = por %p186, %p187
      %p189 = scmp.ne.s32.totalorder %s175, %s176
      %p190 = scmp.eq.s32.totalorder %s25, 1
      %p191 = por %p189, %p190
      %p193 = scmp.ne.s32.totalorder %s176, %s192
      %p194 = scmp.eq.s32.totalorder %s25, 0
      %p195 = por %p193, %p194
      %p196 = scmp.le.s32.totalorder 1, %s19
      %p197 = scmp.lt.s32.totalorder %s19, 3
      %p198 = pnand %p196, %p197
      %p199 = pneg %p198
      // Predicated region
      $region9: #{tpu_custom_call.1} parent=5 // pred_check
        _
      $region10: #{tpu_custom_call.1} parent=5 // pred_check_branch
        %201 = sbr.rel (%p198) target = $region12
      $region11: #{tpu_custom_call.1} parent=5 // pred_region
        %s202 = ssub.s32 %s19, 1
        // Predicated region
        $region13: #{tpu_custom_call.1} parent=11 // pred_check
          %p203 = pneg %p52
        $region14: #{tpu_custom_call.1} parent=11 // pred_check_branch
          %205 = sbr.rel (%p203) target = $region16
        $region15: #{tpu_custom_call.1} parent=11 // pred_region
          _
        $region16: #{tpu_custom_call.1} parent=11 // pred_fallthru
          _
      $region12: #{tpu_custom_call.1} parent=5 // pred_fallthru
        _
      %p206 = scmp.lt.s32.totalorder %s19, 2
      // Predicated region
      $region17: #{tpu_custom_call.1} parent=5 // pred_check
        %p207 = pneg %p206
      $region18: #{tpu_custom_call.1} parent=5 // pred_check_branch
        %209 = sbr.rel (%p207) target = $region20
      $region19: #{tpu_custom_call.1} parent=5 // pred_region
        // Predicated region
        $region21: #{tpu_custom_call.1} parent=19 // pred_check
          %p210 = pneg %p74
        $region22: #{tpu_custom_call.1} parent=19 // pred_check_branch
          %212 = sbr.rel (%p210) target = $region24
        $region23: #{tpu_custom_call.1} parent=19 // pred_region
          %p213 = scmp.lt.s32.totalorder %s26, 1
          %s214 = scalar_select %p213, %s26, 1
          %p215 = scmp.lt.s32.totalorder %s27, 0
          %s216 = scalar_select %p215, %s27, 0
          %s217 = sadd.s32 %s216, %s214
          %s218 = smul.addr %s217, 8
          %s219 = scalar_lea.vmem %s1, %s218
        $region24: #{tpu_custom_call.1} parent=19 // pred_fallthru
          _
        // Predicated region
        $region25: #{tpu_custom_call.1} parent=19 // pred_check
          %p220 = pneg %p100
        $region26: #{tpu_custom_call.1} parent=19 // pred_check_branch
          %222 = sbr.rel (%p220) target = $region28
        $region27: #{tpu_custom_call.1} parent=19 // pred_region
          %p223 = scmp.lt.s32.totalorder %s26, 1
          %s224 = scalar_select %p223, %s26, 1
          %s225 = smul.addr %s224, 16
          %s226 = smul.addr %s225, 8
          %s227 = scalar_lea.vmem %s2, %s226
        $region28: #{tpu_custom_call.1} parent=19 // pred_fallthru
          _
        // Predicated region
        $region29: #{tpu_custom_call.1} parent=19 // pred_check
          %p228 = pneg %p126
        $region30: #{tpu_custom_call.1} parent=19 // pred_check_branch
          %230 = sbr.rel (%p228) target = $region32
        $region31: #{tpu_custom_call.1} parent=19 // pred_region
          %p231 = scmp.lt.s32.totalorder %s26, 1
          %s232 = scalar_select %p231, %s26, 1
          %s233 = smul.addr %s232, 16
          %s234 = smul.addr %s233, 8
          %s235 = scalar_lea.vmem %s3, %s234
        $region32: #{tpu_custom_call.1} parent=19 // pred_fallthru
          _
      $region20: #{tpu_custom_call.1} parent=5 // pred_fallthru
        _
      %p236 = scmp.le.s32.totalorder 1, %s19
      %p237 = scmp.lt.s32.totalorder %s19, 3
      %p238 = pnand %p236, %p237
      %p239 = pneg %p238
      // Predicated region
      $region33: #{tpu_custom_call.1} parent=5 // pred_check
        _
      $region34: #{tpu_custom_call.1} parent=5 // pred_check_branch
        %241 = sbr.rel (%p238) target = $region36
      $region35: #{tpu_custom_call.1} parent=5 // pred_region
        %s242 = ssub.s32 %s19, 1
        %p243 = pneg %p52
        %p244 = pneg %p49
        %p245 = scmp.lt.s32.totalorder %s28, 1
        %s246 = scalar_select %p245, %s28, 1
        %p247 = scmp.lt.s32.totalorder %s29, 0
        %s248 = scalar_select %p247, %s29, 0
        %s249 = sadd.s32 %s248, %s246
        %s250 = smul.addr %s249, 8
        %s251 = scalar_lea.vmem %s1, %s250
        %p252 = pneg %p80
        %p253 = pneg %p77
        %p254 = scmp.lt.s32.totalorder %s28, 1
        %s255 = scalar_select %p254, %s28, 1
        %s256 = smul.addr %s255, 16
        %s257 = smul.addr %s256, 8
        %s258 = scalar_lea.vmem %s2, %s257
        %p259 = pneg %p106
        %p260 = pneg %p103
        %p261 = scmp.lt.s32.totalorder %s28, 1
        %s262 = scalar_select %p261, %s28, 1
        %s263 = smul.addr %s262, 16
        %s264 = smul.addr %s263, 8
        %s265 = scalar_lea.vmem %s3, %s264
        %p266 = pneg %p132
        %p267 = pneg %p129
        %p268 = pneg %p160
        %p269 = pneg %p157
        %s270 = sand.u32 %s147, 1
        %s271 = scalar_lea.sflag [#allocation4], %s270
        %s272 = sand.u32 %s147, 1
        %s273 = smul.addr %s272, 8
        %s274 = scalar_lea.vmem [#allocation3], %s273
        %p275 = pneg %p188
        %p276 = pneg %p185
        %s277 = sand.u32 %s175, 1
        %s278 = scalar_lea.sflag [#allocation6], %s277
        %s279 = sand.u32 %s175, 1
        %s280 = smul.addr %s279, 8
        %s281 = scalar_lea.vmem [#allocation5], %s280
        %p282 = scmp.lt.s32.totalorder %s28, 1
        %s283 = scalar_select %p282, %s28, 1
        %p284 = scmp.lt.s32.totalorder %s29, 0
        %s285 = scalar_select %p284, %s29, 0
        %s286 = sadd.s32 %s285, %s283
        %s287 = smul.addr %s286, 8
        %s288 = scalar_lea.vmem %s1, %s287
        %p289 = scmp.lt.s32.totalorder %s28, 1
        %s290 = scalar_select %p289, %s28, 1
        %s291 = smul.addr %s290, 16
        %s292 = smul.addr %s291, 8
        %s293 = scalar_lea.vmem %s2, %s292
        %p294 = scmp.lt.s32.totalorder %s28, 1
        %s295 = scalar_select %p294, %s28, 1
        %s296 = smul.addr %s295, 16
        %s297 = smul.addr %s296, 8
        %s298 = scalar_lea.vmem %s3, %s297
        %s299 = sld [smem:[#allocation2]]
        %v300 = vld [vmem:[%s288] sm:$0xff]
        %v301 = vstv %s299
        %v302 = vmul.f32 %v300, %v301
        %v303 = vld [vmem:[%s293] sm:$0xff]
        %v304 = vld [vmem:[%s293 + $0x8] sm:$0xff]
        %v305 = vld [vmem:[%s293 + $0x10] sm:$0xff]
        %v306 = vld [vmem:[%s293 + $0x18] sm:$0xff]
        %v307 = vld [vmem:[%s293 + $0x20] sm:$0xff]
        %v308 = vld [vmem:[%s293 + $0x28] sm:$0xff]
        %v309 = vld [vmem:[%s293 + $0x30] sm:$0xff]
        %v310 = vld [vmem:[%s293 + $0x38] sm:$0xff]
        %v311 = vld [vmem:[%s293 + $0x40] sm:$0xff]
        %v312 = vld [vmem:[%s293 + $0x48] sm:$0xff]
        %v313 = vld [vmem:[%s293 + $0x50] sm:$0xff]
        %v314 = vld [vmem:[%s293 + $0x58] sm:$0xff]
        %v315 = vld [vmem:[%s293 + $0x60] sm:$0xff]
        %v316 = vld [vmem:[%s293 + $0x68] sm:$0xff]
        %v317 = vld [vmem:[%s293 + $0x70] sm:$0xff]
        %v318 = vld [vmem:[%s293 + $0x78] sm:$0xff]
        %v319 = vld [vmem:[%s298] sm:$0xff]
        %v320 = vld [vmem:[%s298 + $0x8] sm:$0xff]
        %v321 = vld [vmem:[%s298 + $0x10] sm:$0xff]
        %v322 = vld [vmem:[%s298 + $0x18] sm:$0xff]
        %v323 = vld [vmem:[%s298 + $0x20] sm:$0xff]
        %v324 = vld [vmem:[%s298 + $0x28] sm:$0xff]
        %v325 = vld [vmem:[%s298 + $0x30] sm:$0xff]
        %v326 = vld [vmem:[%s298 + $0x38] sm:$0xff]
        %v327 = vld [vmem:[%s298 + $0x40] sm:$0xff]
        %v328 = vld [vmem:[%s298 + $0x48] sm:$0xff]
        %v329 = vld [vmem:[%s298 + $0x50] sm:$0xff]
        %v330 = vld [vmem:[%s298 + $0x58] sm:$0xff]
        %v331 = vld [vmem:[%s298 + $0x60] sm:$0xff]
        %v332 = vld [vmem:[%s298 + $0x68] sm:$0xff]
        %v333 = vld [vmem:[%s298 + $0x70] sm:$0xff]
        %v334 = vld [vmem:[%s298 + $0x78] sm:$0xff]
        %vm335 = vcmask 261120
        %v337 = vsel %vm335, %v302, 0
        %v340 = vsel %vm335, %v303, 0
        %v343 = vsel %vm335, %v304, 0
        %v346 = vsel %vm335, %v305, 0
        %v349 = vsel %vm335, %v306, 0
        %v352 = vsel %vm335, %v307, 0
        %v355 = vsel %vm335, %v308, 0
        %v358 = vsel %vm335, %v309, 0
        %v361 = vsel %vm335, %v310, 0
        %v364 = vsel %vm335, %v311, 0
        %v367 = vsel %vm335, %v312, 0
        %v370 = vsel %vm335, %v313, 0
        %v373 = vsel %vm335, %v314, 0
        %v376 = vsel %vm335, %v315, 0
        %v379 = vsel %vm335, %v316, 0
        %v382 = vsel %vm335, %v317, 0
        %v385 = vsel %vm335, %v318, 0
        %387 = vmatprep.subr.mxu0 0.0
        %388 = vmatpush1.xpose.msra.mxu0 %v340
        %389 = vmatprep.subr.mxu0 0.0
        %390 = vmatpush1.xpose.msra.mxu0 %v343
        %391 = vmatprep.subr.mxu0 0.0
        %392 = vmatpush1.xpose.msra.mxu0 %v346
        %393 = vmatprep.subr.mxu0 0.0
        %394 = vmatpush1.xpose.msra.mxu0 %v349
        %395 = vmatprep.subr.mxu0 0.0
        %396 = vmatpush1.xpose.msra.mxu0 %v352
        %397 = vmatprep.subr.mxu0 0.0
        %398 = vmatpush1.xpose.msra.mxu0 %v355
        %399 = vmatprep.subr.mxu0 0.0
        %400 = vmatpush1.xpose.msra.mxu0 %v358
        %401 = vmatprep.subr.mxu0 0.0
        %402 = vmatpush1.xpose.msra.mxu0 %v361
        %403 = vmatprep.subr.mxu0 0.0
        %404 = vmatpush1.xpose.msra.mxu0 %v364
        %405 = vmatprep.subr.mxu0 0.0
        %406 = vmatpush1.xpose.msra.mxu0 %v367
        %407 = vmatprep.subr.mxu0 0.0
        %408 = vmatpush1.xpose.msra.mxu0 %v370
        %409 = vmatprep.subr.mxu0 0.0
        %410 = vmatpush1.xpose.msra.mxu0 %v373
        %411 = vmatprep.subr.mxu0 0.0
        %412 = vmatpush1.xpose.msra.mxu0 %v376
        %413 = vmatprep.subr.mxu0 0.0
        %414 = vmatpush1.xpose.msra.mxu0 %v379
        %415 = vmatprep.subr.mxu0 0.0
        %416 = vmatpush1.xpose.msra.mxu0 %v382
        %417 = vmatprep.subr.mxu0 0.0
        %418 = vmatpush1.xpose.msra.mxu0 %v385
        %419 = vmatprep.subr.mxu0 0.0
        %420 = vmatpush1.xpose.msra.mxu0 0.0
        %421 = vmatprep.subr.mxu0 0.0
        %422 = vmatpush1.xpose.msra.mxu0 0.0
        %423 = vmatprep.subr.mxu0 0.0
        %424 = vmatpush1.xpose.msra.mxu0 0.0
        %425 = vmatprep.subr.mxu0 0.0
        %426 = vmatpush1.xpose.msra.mxu0 0.0
        %427 = vmatprep.subr.mxu0 0.0
        %428 = vmatpush1.xpose.msra.mxu0 0.0
        %429 = vmatprep.subr.mxu0 0.0
        %430 = vmatpush1.xpose.msra.mxu0 0.0
        %431 = vmatprep.subr.mxu0 0.0
        %432 = vmatpush1.xpose.msra.mxu0 0.0
        %433 = vmatprep.subr.mxu0 0.0
        %434 = vmatpush1.xpose.msra.mxu0 0.0
        %435 = vmatprep.subr.mxu0 0.0
        %436 = vmatpush1.xpose.msra.mxu0 0.0
        %437 = vmatprep.subr.mxu0 0.0
        %438 = vmatpush1.xpose.msra.mxu0 0.0
        %439 = vmatprep.subr.mxu0 0.0
        %440 = vmatpush1.xpose.msra.mxu0 0.0
        %441 = vmatprep.subr.mxu0 0.0
        %442 = vmatpush1.xpose.msra.mxu0 0.0
        %443 = vmatprep.subr.mxu0 0.0
        %444 = vmatpush1.xpose.msra.mxu0 0.0
        %445 = vmatprep.subr.mxu0 0.0
        %446 = vmatpush1.xpose.msra.mxu0 0.0
        %447 = vmatprep.subr.mxu0 0.0
        %448 = vmatpush1.xpose.msra.mxu0 0.0
        %449 = vmatprep.subr.mxu0 0.0
        %450 = vmatpush1.xpose.msra.mxu0 0.0
        %451 = vmatprep.mubr.f32.mxu0 0.0
        %452 = vmatmul.mubr.f32.gmra.mrb[0].mxu0 %v337
        %v453 = vpop.f32.mrb[0].mxu0
        %v454 = vadd.f32 0.0, %v453
        %v455 = vpop.f32.mrb[0].mxu0
        %456 = vdwg.mxu0
        %v457 = vlaneseq
        %v458 = vand.u32 %v457, 127
        %vm459 = vcmp.lt.s32.totalorder %v458, 8
        %v460 = vsel %vm459, %v454, -inf
        %461 = vmax.xlane.f32.xlu0 %v460
        %v462 = vpop.xlane.xlu0 %461
        %v463 = vsub.f32 %v460, %v462
        %v464 = vmul.f32 %v463, 1.442695
        %v465 = vpow.pop %v464
        %466 = vadd.xlane.f32.xlu0 %v465
        %v467 = vpop.xlane.xlu0 %466
        %v468 = vrcp.pop %v467
        %v469 = vmul.f32 %v465, %v468
        %470 = vst [vmem:[%s281] sm:$0xff] %v469
        %471 = vmatprep.subr.mxu0 0.0
        %472 = vmatpush1.msra.mxu0 %v319
        %473 = vmatprep.subr.mxu0 0.0
        %474 = vmatpush1.msra.mxu0 %v320
        %475 = vmatprep.subr.mxu0 0.0
        %476 = vmatpush1.msra.mxu0 %v321
        %477 = vmatprep.subr.mxu0 0.0
        %478 = vmatpush1.msra.mxu0 %v322
        %479 = vmatprep.subr.mxu0 0.0
        %480 = vmatpush1.msra.mxu0 %v323
        %481 = vmatprep.subr.mxu0 0.0
        %482 = vmatpush1.msra.mxu0 %v324
        %483 = vmatprep.subr.mxu0 0.0
        %484 = vmatpush1.msra.mxu0 %v325
        %485 = vmatprep.subr.mxu0 0.0
        %486 = vmatpush1.msra.mxu0 %v326
        %487 = vmatprep.subr.mxu0 0.0
        %488 = vmatpush1.msra.mxu0 %v327
        %489 = vmatprep.subr.mxu0 0.0
        %490 = vmatpush1.msra.mxu0 %v328
        %491 = vmatprep.subr.mxu0 0.0
        %492 = vmatpush1.msra.mxu0 %v329
        %493 = vmatprep.subr.mxu0 0.0
        %494 = vmatpush1.msra.mxu0 %v330
        %495 = vmatprep.subr.mxu0 0.0
        %496 = vmatpush1.msra.mxu0 %v331
        %497 = vmatprep.subr.mxu0 0.0
        %498 = vmatpush1.msra.mxu0 %v332
        %499 = vmatprep.subr.mxu0 0.0
        %500 = vmatpush1.msra.mxu0 %v333
        %501 = vmatprep.subr.mxu0 0.0
        %502 = vmatpush1.msra.mxu0 %v334
        %503 = vmatprep.subr.mxu0 0.0
        %504 = vmatpush1.msra.mxu0 0.0
        %505 = vmatprep.subr.mxu0 0.0
        %506 = vmatpush1.msra.mxu0 0.0
        %507 = vmatprep.subr.mxu0 0.0
        %508 = vmatpush1.msra.mxu0 0.0
        %509 = vmatprep.subr.mxu0 0.0
        %510 = vmatpush1.msra.mxu0 0.0
        %511 = vmatprep.subr.mxu0 0.0
        %512 = vmatpush1.msra.mxu0 0.0
        %513 = vmatprep.subr.mxu0 0.0
        %514 = vmatpush1.msra.mxu0 0.0
        %515 = vmatprep.subr.mxu0 0.0
        %516 = vmatpush1.msra.mxu0 0.0
        %517 = vmatprep.subr.mxu0 0.0
        %518 = vmatpush1.msra.mxu0 0.0
        %519 = vmatprep.subr.mxu0 0.0
        %520 = vmatpush1.msra.mxu0 0.0
        %521 = vmatprep.subr.mxu0 0.0
        %522 = vmatpush1.msra.mxu0 0.0
        %523 = vmatprep.subr.mxu0 0.0
        %524 = vmatpush1.msra.mxu0 0.0
        %525 = vmatprep.subr.mxu0 0.0
        %526 = vmatpush1.msra.mxu0 0.0
        %527 = vmatprep.subr.mxu0 0.0
        %528 = vmatpush1.msra.mxu0 0.0
        %529 = vmatprep.subr.mxu0 0.0
        %530 = vmatpush1.msra.mxu0 0.0
        %531 = vmatprep.subr.mxu0 0.0
        %532 = vmatpush1.msra.mxu0 0.0
        %533 = vmatprep.subr.mxu0 0.0
        %534 = vmatpush1.msra.mxu0 0.0
        %535 = vmatprep.mubr.f32.mxu0 0.0
        %536 = vmatmul.mubr.f32.gmra.mrb[0].mxu0 %v469
        %v537 = vpop.f32.mrb[0].mxu0
        %v538 = vadd.f32 0.0, %v537
        %v539 = vpop.f32.mrb[0].mxu0
        %540 = vdwg.mxu0
        %541 = vst [vmem:[%s274] sm:$0xff] %v538
        %s542 = sand.u32 %s147, 1
        %s543 = scalar_lea.sflag [#allocation4], %s542
        %s544 = sand.u32 %s147, 1
        %s545 = smul.addr %s544, 8
        %s546 = scalar_lea.vmem [#allocation3], %s545
        %s547 = sand.u32 %s175, 1
        %s548 = scalar_lea.sflag [#allocation6], %s547
        %s549 = sand.u32 %s175, 1
        %s550 = smul.addr %s549, 8
        %s551 = scalar_lea.vmem [#allocation5], %s550
        // Predicated region
        $region37: #{tpu_custom_call.1} parent=35 // pred_check
          %p552 = pneg %p157
        $region38: #{tpu_custom_call.1} parent=35 // pred_check_branch
          %554 = sbr.rel (%p552) target = $region40
        $region39: #{tpu_custom_call.1} parent=35 // pred_region
          %s556 = ssub.s32 128, 128
          %557 = vsyncadd %s543, %s556
          %s558 = sadd.s32 %s29, %s28
          %s559 = smul.addr %s558, 128
          %s560 = scalar_lea.hbm %s4, %s559
          %s562 = sshll.u32 %s546, 4
          %s563 = int_to_ptr.vmem [resolvable:$true] %s562
          %565 = dma.vmem_to_hbm [thread:$0]  %s563, 128, %s560, %s543
        $region40: #{tpu_custom_call.1} parent=35 // pred_fallthru
          _
        // Predicated region
        $region41: #{tpu_custom_call.1} parent=35 // pred_check
          %p566 = pneg %p185
        $region42: #{tpu_custom_call.1} parent=35 // pred_check_branch
          %568 = sbr.rel (%p566) target = $region44
        $region43: #{tpu_custom_call.1} parent=35 // pred_region
          %s570 = ssub.s32 128, 128
          %571 = vsyncadd %s548, %s570
          %s572 = sadd.s32 %s29, %s28
          %s573 = smul.addr %s572, 128
          %s574 = scalar_lea.hbm %s5, %s573
          %s576 = sshll.u32 %s551, 4
          %s577 = int_to_ptr.vmem [resolvable:$true] %s576
          %579 = dma.vmem_to_hbm [thread:$0]  %s577, 128, %s574, %s548
        $region44: #{tpu_custom_call.1} parent=35 // pred_fallthru
          _
      $region36: #{tpu_custom_call.1} parent=5 // pred_fallthru
        _
      %p580 = scmp.le.s32.totalorder 2, %s19
      // Predicated region
      $region45: #{tpu_custom_call.1} parent=5 // pred_check
        %p581 = pneg %p580
      $region46: #{tpu_custom_call.1} parent=5 // pred_check_branch
        %583 = sbr.rel (%p581) target = $region48
      $region47: #{tpu_custom_call.1} parent=5 // pred_region
        %s584 = ssub.s32 %s19, 2
        // Predicated region
        $region49: #{tpu_custom_call.1} parent=47 // pred_check
          %p585 = pneg %p163
        $region50: #{tpu_custom_call.1} parent=47 // pred_check_branch
          %587 = sbr.rel (%p585) target = $region52
        $region51: #{tpu_custom_call.1} parent=47 // pred_region
          %s588 = sand.u32 %s148, 1
          %s589 = scalar_lea.sflag [#allocation4], %s588
          %s590 = sand.u32 %s148, 1
          %s591 = smul.addr %s590, 8
          %s592 = scalar_lea.vmem [#allocation3], %s591
          %593 = dma.done %s589, 128
        $region52: #{tpu_custom_call.1} parent=47 // pred_fallthru
          _
        // Predicated region
        $region53: #{tpu_custom_call.1} parent=47 // pred_check
          %p594 = pneg %p191
        $region54: #{tpu_custom_call.1} parent=47 // pred_check_branch
          %596 = sbr.rel (%p594) target = $region56
        $region55: #{tpu_custom_call.1} parent=47 // pred_region
          %s597 = sand.u32 %s176, 1
          %s598 = scalar_lea.sflag [#allocation6], %s597
          %s599 = sand.u32 %s176, 1
          %s600 = smul.addr %s599, 8
          %s601 = scalar_lea.vmem [#allocation5], %s600
          %602 = dma.done %s598, 128
        $region56: #{tpu_custom_call.1} parent=47 // pred_fallthru
          _
      $region48: #{tpu_custom_call.1} parent=5 // pred_fallthru
        _
    $region6: #{tpu_custom_call.1} parent=1 // loop_footer
      %s23 = sadd.s32 1, %s19
    $region7: #{tpu_custom_call.1} parent=1 // loop_footer_branch
      %18 = sbr.rel target = $region3
    $region8: #{tpu_custom_call.1} parent=1 // loop_exit
      _
    %603 = vsyncpa [#allocation4], 1
    %s604 = scalar_lea.sflag [#allocation4], 1
    %605 = vsyncpa %s604, 1
    %606 = vsyncpa [#allocation6], 1
    %s607 = scalar_lea.sflag [#allocation6], 1
    %608 = vsyncpa %s607, 1

</llo_original>
